<compile_context>
chip_gen: v6e
topology: v6e:2x2x1
jax: 0.10.0
libtpu: 0.0.40
codegen_flags: <defaults>
</compile_context>

<pallas_src>
import math

import numpy as np

import jax
import jax.numpy as jnp
from jax.experimental import pallas as pl
from jax.experimental.pallas import tpu as pltpu

# ----------------------------------------------------------------------------
# Deterministic "module" parameters (shapes/values from __init__).
# ----------------------------------------------------------------------------
R_BUF = 1.0          # buffer r
F_BUF = 1000.0       # buffer f (Hz)
SAMPLE_RATE = 44100.0

GF = 1.5755          # nn.Parameter gf
GR = 1.2305          # nn.Parameter gr
GAIN = 3.0912        # nn.Parameter gain (used in C)
ALPHA = 0.7624       # nn.Parameter alpha
K_STEP = 1.0 / SAMPLE_RATE

TOL = 1e-9
MAX_ITER = 50

LANE_BLOCK = 128     # batch lanes per grid step (lane-dense)

# Compile-time scalar coefficients.
W_CONST = 2.0 * math.pi * GF * F_BUF          # w = 2*pi*gf*f
C_A = K_STEP * (1.0 - ALPHA / 2.0)            # k * (1 - alpha/2)
C_K = K_STEP * (ALPHA / 2.0)                  # k * alpha/2
KW_A = C_A * W_CONST                          # |w| entries of k_A_mul
KW_K = C_K * W_CONST                          # |w| entries of K


# ----------------------------------------------------------------------------
# Pallas kernel: in-kernel matrix setup + batched Newton solve + C @ x.
# Layout: state-major rows (1, LANE_BLOCK), batch on lanes.
# ----------------------------------------------------------------------------
def moog_cell_kernel(sc_ref, u_ref, u1_ref, x1_ref, x_out_ref, y_out_ref):
    sc = sc_ref[...]                    # (1, 2) = [prev_state[0,3], prev_input[0]]
    x4 = sc[:, 0:1]                     # (1, 1)
    u0 = sc[:, 1:2]                     # (1, 1)

    u = u_ref[...]                      # (1, LB)
    u1 = u1_ref[...]                    # (1, LB)
    xp = x1_ref[...]                    # (4, LB)  previous state

    # ---- update_matrices scalar math (on (1,1) tiles) -----------------------
    safe_x4 = jnp.where(x4 == 0.0, 1.0, x4)
    a03 = jnp.where(
        x4 == 0.0,
        -W_CONST * 4.0 * GR * R_BUF,
        -W_CONST * jnp.tanh(4.0 * GR * R_BUF * safe_x4) / jnp.tanh(safe_x4),
    )                                                    # A[0, 3]
    xb = (GR * R_BUF) * x4
    safe_xb = jnp.where(xb == 0.0, 1.0, xb)
    miu = jnp.where(xb == 0.0, 1.0, jnp.tanh(safe_xb) / safe_xb)
    thb = jnp.tanh(xb)
    beta = miu * (1.0 - thb * thb) / (1.0 - thb * jnp.tanh(u0))
    b0 = W_CONST * beta                                  # B[0, 0] (only nonzero entry)

    ka_A = C_A * a03                    # (1,1) k_A_mul[0,3]
    ka_K = C_K * a03                    # (1,1) K[0,3]
    kb_m = C_A * b0                     # (1,1) k_b_mul[0,0]
    kb_a = C_K * b0                     # (1,1) k_b_al[0,0]

    # ---- p_n = x_n1 + k_A_mul @ tanh(x_n1) + k_b_mul @ u_n + k_b_al @ u_n1 --
    xp0, xp1, xp2, xp3 = xp[0:1, :], xp[1:2, :], xp[2:3, :], xp[3:4, :]
    th = jnp.tanh(xp)                                    # one EUP op on (4, LB)
    t0_0, t1_0, t2_0, t3_0 = th[0:1, :], th[1:2, :], th[2:3, :], th[3:4, :]

    p0 = xp0 + (ka_A * t3_0 - KW_A * t0_0) + kb_m * u + kb_a * u1
    p1 = xp1 + KW_A * (t0_0 - t1_0)
    p2 = xp2 + KW_A * (t1_0 - t2_0)
    p3 = xp3 + KW_A * (t2_0 - t3_0)

    # Hoist the (1,1)->(1,LB) lane broadcast of K[0,3] out of the Newton loop.
    ka_K_v = jnp.broadcast_to(ka_K, u.shape)

    # ---- Newton loop: per-sample freeze mask + global early exit ------------
    def cond(carry):
        it = carry[0]
        conv = carry[-1]
        return jnp.logical_and(it < MAX_ITER, jnp.min(conv) < 0.5)

    def body(carry):
        it, x0, x1r, x2r, x3r, t0, t1, t2, t3, conv = carry
        s0 = 1.0 - t0 * t0
        s1 = 1.0 - t1 * t1
        s2 = 1.0 - t2 * t2
        s3 = 1.0 - t3 * t3
        # g = p + K @ tanh(x) - x
        g0 = p0 + (ka_K_v * t3 - KW_K * t0) - x0
        g1 = p1 + KW_K * (t0 - t1) - x1r
        g2 = p2 + KW_K * (t1 - t2) - x2r
        g3 = p3 + KW_K * (t2 - t3) - x3r
        # J = K @ (1 - tanh(x)^2) - E   (elementwise, exactly as the reference)
        j0 = (ka_K_v * s3 - KW_K * s0) - 1.0
        j1 = KW_K * (s0 - s1) - 1.0
        j2 = KW_K * (s1 - s2) - 1.0
        j3 = KW_K * (s2 - s3) - 1.0
        d0 = g0 / j0
        d1 = g1 / j1
        d2 = g2 / j2
        d3 = g3 / j3
        active = conv < 0.5
        x0n = x0 - jnp.where(active, d0, 0.0)
        x1n = x1r - jnp.where(active, d1, 0.0)
        x2n = x2r - jnp.where(active, d2, 0.0)
        x3n = x3r - jnp.where(active, d3, 0.0)
        dmax = jnp.maximum(jnp.maximum(jnp.abs(d0), jnp.abs(d1)),
                           jnp.maximum(jnp.abs(d2), jnp.abs(d3)))
        conv_n = jnp.maximum(conv, (dmax <= TOL).astype(jnp.float32))
        return (it + 1, x0n, x1n, x2n, x3n,
                jnp.tanh(x0n), jnp.tanh(x1n), jnp.tanh(x2n), jnp.tanh(x3n),
                conv_n)

    init = (jnp.int32(0), xp0, xp1, xp2, xp3, t0_0, t1_0, t2_0, t3_0,
            jnp.zeros_like(u))
    carry = jax.lax.while_loop(cond, body, init)
    xf0, xf1, xf2, xf3 = carry[1], carry[2], carry[3], carry[4]

    x_out_ref[...] = jnp.concatenate([xf0, xf1, xf2, xf3], axis=0)   # (4, LB)
    y_out_ref[...] = GAIN * xf3                                      # C @ x_n


# ----------------------------------------------------------------------------
# Wrapper reproducing MoogVCFRFModelCell.forward (after update_parameters).
# ----------------------------------------------------------------------------
@jax.jit
def moog_vcf_forward(u_n, x_n1, u_n1):
    """u_n, u_n1: (B,1,1) f32; x_n1: (B,4,1) f32 -> (y_n, x_n, u_n)."""
    u_n = u_n.astype(jnp.float32)
    u_n1 = u_n1.astype(jnp.float32)
    x_n1 = x_n1.astype(jnp.float32)
    B = u_n.shape[0]

    # state-major, batch-on-lanes layout, padded to a lane-dense multiple of 128
    Bp = max(LANE_BLOCK, ((B + LANE_BLOCK - 1) // LANE_BLOCK) * LANE_BLOCK)
    pad = Bp - B
    x1_2d = jnp.transpose(x_n1[:, :, 0])        # (4, B)
    u_2d = jnp.transpose(u_n[:, :, 0])          # (1, B)
    u1_2d = jnp.transpose(u_n1[:, :, 0])        # (1, B)
    if pad:
        x1_2d = jnp.pad(x1_2d, ((0, 0), (0, pad)))
        u_2d = jnp.pad(u_2d, ((0, 0), (0, pad)))
        u1_2d = jnp.pad(u1_2d, ((0, 0), (0, pad)))

    # the only values update_matrices() actually depends on
    sc = jnp.stack([x_n1[0, 3, 0], u_n1[0, 0, 0]]).reshape(1, 2)

    grid = (Bp // LANE_BLOCK,)
    x_out, y_out = pl.pallas_call(
        moog_cell_kernel,
        out_shape=(
            jax.ShapeDtypeStruct((4, Bp), jnp.float32),
            jax.ShapeDtypeStruct((1, Bp), jnp.float32),
        ),
        grid=grid,
        in_specs=[
            pl.BlockSpec((1, 2), lambda i: (0, 0)),               # scalar pair (replicated)
            pl.BlockSpec((1, LANE_BLOCK), lambda i: (0, i)),      # u_n
            pl.BlockSpec((1, LANE_BLOCK), lambda i: (0, i)),      # u_n1
            pl.BlockSpec((4, LANE_BLOCK), lambda i: (0, i)),      # x_n1
        ],
        out_specs=(
            pl.BlockSpec((4, LANE_BLOCK), lambda i: (0, i)),      # x_n
            pl.BlockSpec((1, LANE_BLOCK), lambda i: (0, i)),      # y_n
        ),
        compiler_params=pltpu.CompilerParams(
            dimension_semantics=("parallel",)),
    )(sc, u_2d, u1_2d, x1_2d)

    x_n = jnp.transpose(x_out[:, :B])[:, :, None]   # (B, 4, 1)
    y_n = jnp.transpose(y_out[:, :B])[:, :, None]   # (B, 1, 1)
    return y_n, x_n, u_n


# ----------------------------------------------------------------------------
# Pure-JAX restatement of the PyTorch reference (for the self-check).
# ----------------------------------------------------------------------------
@jax.jit
def reference_forward(u_n, x_n1, u_n1):
    u_n = u_n.astype(jnp.float32)
    u_n1 = u_n1.astype(jnp.float32)
    x_n1 = x_n1.astype(jnp.float32)
    B = u_n.shape[0]

    w = W_CONST
    x4 = x_n1[0, 3, 0]
    u0 = u_n1[0, 0, 0]
    safe_x4 = jnp.where(x4 == 0.0, 1.0, x4)
    a03 = jnp.where(x4 == 0.0, -w * 4.0 * GR * R_BUF,
                    -w * jnp.tanh(4.0 * GR * R_BUF * safe_x4) / jnp.tanh(safe_x4))
    A = jnp.array([[-w, 0.0, 0.0, 0.0],
                   [w, -w, 0.0, 0.0],
                   [0.0, w, -w, 0.0],
                   [0.0, 0.0, w, -w]], dtype=jnp.float32)
    A = A.at[0, 3].set(a03.astype(jnp.float32))
    xb = (GR * R_BUF) * x4
    safe_xb = jnp.where(xb == 0.0, 1.0, xb)
    miu = jnp.where(xb == 0.0, 1.0, jnp.tanh(safe_xb) / safe_xb)
    thb = jnp.tanh(xb)
    beta = miu * (1.0 - thb * thb) / (1.0 - thb * jnp.tanh(u0))
    Bm = jnp.zeros((4, 1), jnp.float32).at[0, 0].set((w * beta).astype(jnp.float32))
    Cm = jnp.array([[0.0, 0.0, 0.0, GAIN]], dtype=jnp.float32)

    kA = (C_A * A).astype(jnp.float32)
    Km = (C_K * A).astype(jnp.float32)
    kbm = (C_A * Bm).astype(jnp.float32)
    kba = (C_K * Bm).astype(jnp.float32)

    x1 = x_n1[:, :, 0]              # (B, 4)
    uu = u_n[:, :, 0]               # (B, 1)
    uu1 = u_n1[:, :, 0]             # (B, 1)
    p = x1 + jnp.tanh(x1) @ kA.T + uu @ kbm.T + uu1 @ kba.T

    def body(j, carry):
        x, conv = carry
        t = jnp.tanh(x)
        g = p + t @ Km.T - x
        J = (1.0 - t * t) @ Km.T - 1.0
        d = g / J
        active = conv < 0.5
        xn = x - jnp.where(active, d, 0.0)
        dmax = jnp.max(jnp.abs(d), axis=1, keepdims=True)
        convn = jnp.maximum(conv, (dmax <= TOL).astype(jnp.float32))
        return xn, convn

    xf, _ = jax.lax.fori_loop(0, MAX_ITER, body,
                              (x1, jnp.zeros((B, 1), jnp.float32)))
    y = xf @ Cm.T
    return y[:, :, None], xf[:, :, None], u_n


if __name__ == "__main__":
    key = jax.random.PRNGKey(0)
    k1, k2, k3 = jax.random.split(key, 3)
    batch = 8

    u_n = 0.1 * jax.random.normal(k1, (batch, 1, 1), dtype=jnp.float32)
    u_n1 = 0.1 * jax.random.normal(k2, (batch, 1, 1), dtype=jnp.float32)
    x_n1 = 0.1 * jax.random.normal(k3, (batch, 4, 1), dtype=jnp.float32)

    y_n, x_n, u_out = moog_vcf_forward(u_n, x_n1, u_n1)
    jax.block_until_ready((y_n, x_n, u_out))

    assert y_n.shape == (batch, 1, 1) and y_n.dtype == jnp.float32
    assert x_n.shape == (batch, 4, 1) and x_n.dtype == jnp.float32
    assert u_out.shape == (batch, 1, 1)

    # Numerical check against the pure-JAX restatement of the PyTorch module.
    y_r, x_r, _ = reference_forward(u_n, x_n1, u_n1)
    np.testing.assert_allclose(np.asarray(y_n), np.asarray(y_r), rtol=1e-4, atol=1e-5)
    np.testing.assert_allclose(np.asarray(x_n), np.asarray(x_r), rtol=1e-4, atol=1e-5)

    print("KERNEL_OK")
</pallas_src>

<mosaic_0001>
module attributes {stable_mosaic.version = 11 : i64} {
  func.func @moog_cell_kernel(%arg0: i32, %arg1: memref<1x2xf32, #tpu.memory_space<vmem>>, %arg2: memref<1x128xf32, #tpu.memory_space<vmem>>, %arg3: memref<1x128xf32, #tpu.memory_space<vmem>>, %arg4: memref<4x128xf32, #tpu.memory_space<vmem>>, %arg5: memref<4x128xf32, #tpu.memory_space<vmem>>, %arg6: memref<1x128xf32, #tpu.memory_space<vmem>>) attributes {dimension_semantics = [#tpu.dimension_semantics<parallel>], iteration_bounds = array<i64: 1>, scalar_prefetch = 0 : i64, scratch_operands = 0 : i64, tpu.core_type = #tpu.core_type<tc>, window_params = [{pipeline_mode = #tpu.pipeline_mode<synchronous>, transform_indices = @transform_0, window_bounds = array<i64: 1, 2>}, {transform_indices = @transform_1, window_bounds = array<i64: 1, 128>}, {transform_indices = @transform_2, window_bounds = array<i64: 1, 128>}, {transform_indices = @transform_3, window_bounds = array<i64: 4, 128>}, {transform_indices = @transform_4, window_bounds = array<i64: 4, 128>}, {transform_indices = @transform_5, window_bounds = array<i64: 1, 128>}]} {
    %c0 = arith.constant 0 : index
    %c0_0 = arith.constant 0 : index
    %0 = vector.load %arg1[%c0, %c0_0] : memref<1x2xf32, #tpu.memory_space<vmem>>, vector<1x2xf32>
    %1 = vector.extract_strided_slice %0 {offsets = [0, 0], sizes = [1, 1], strides = [1, 1]} : vector<1x2xf32> to vector<1x1xf32>
    %2 = vector.extract_strided_slice %0 {offsets = [0, 1], sizes = [1, 1], strides = [1, 1]} : vector<1x2xf32> to vector<1x1xf32>
    %c0_1 = arith.constant 0 : index
    %c0_2 = arith.constant 0 : index
    %3 = vector.load %arg2[%c0_1, %c0_2] : memref<1x128xf32, #tpu.memory_space<vmem>>, vector<1x128xf32>
    %c0_3 = arith.constant 0 : index
    %c0_4 = arith.constant 0 : index
    %4 = vector.load %arg3[%c0_3, %c0_4] : memref<1x128xf32, #tpu.memory_space<vmem>>, vector<1x128xf32>
    %c0_5 = arith.constant 0 : index
    %c0_6 = arith.constant 0 : index
    %5 = vector.load %arg4[%c0_5, %c0_6] : memref<4x128xf32, #tpu.memory_space<vmem>>, vector<4x128xf32>
    %cst = arith.constant 0.000000e+00 : f32
    %6 = vector.broadcast %cst : f32 to vector<1x1xf32>
    %7 = arith.cmpf oeq, %1, %6 : vector<1x1xf32>
    %cst_7 = arith.constant 1.000000e+00 : f32
    %8 = vector.broadcast %cst_7 : f32 to vector<1x1xf32>
    %9 = arith.select %7, %8, %1 : vector<1x1xi1>, vector<1x1xf32>
    %cst_8 = arith.constant 0.000000e+00 : f32
    %10 = vector.broadcast %cst_8 : f32 to vector<1x1xf32>
    %11 = arith.cmpf oeq, %1, %10 : vector<1x1xf32>
    %cst_9 = arith.constant 4.922000e+00 : f32
    %12 = vector.broadcast %cst_9 : f32 to vector<1x1xf32>
    %13 = arith.mulf %12, %9 : vector<1x1xf32>
    %14 = math.tanh %13 : vector<1x1xf32>
    %cst_10 = arith.constant -9899.1582 : f32
    %15 = vector.broadcast %cst_10 : f32 to vector<1x1xf32>
    %16 = arith.mulf %15, %14 : vector<1x1xf32>
    %17 = math.tanh %9 : vector<1x1xf32>
    %18 = arith.divf %16, %17 : vector<1x1xf32>
    %cst_11 = arith.constant -48723.6563 : f32
    %19 = vector.broadcast %cst_11 : f32 to vector<1x1xf32>
    %20 = arith.select %11, %19, %18 : vector<1x1xi1>, vector<1x1xf32>
    %cst_12 = arith.constant 1.230500e+00 : f32
    %21 = vector.broadcast %cst_12 : f32 to vector<1x1xf32>
    %22 = arith.mulf %21, %1 : vector<1x1xf32>
    %cst_13 = arith.constant 0.000000e+00 : f32
    %23 = vector.broadcast %cst_13 : f32 to vector<1x1xf32>
    %24 = arith.cmpf oeq, %22, %23 : vector<1x1xf32>
    %cst_14 = arith.constant 1.000000e+00 : f32
    %25 = vector.broadcast %cst_14 : f32 to vector<1x1xf32>
    %26 = arith.select %24, %25, %22 : vector<1x1xi1>, vector<1x1xf32>
    %cst_15 = arith.constant 0.000000e+00 : f32
    %27 = vector.broadcast %cst_15 : f32 to vector<1x1xf32>
    %28 = arith.cmpf oeq, %22, %27 : vector<1x1xf32>
    %29 = math.tanh %26 : vector<1x1xf32>
    %30 = arith.divf %29, %26 : vector<1x1xf32>
    %cst_16 = arith.constant 1.000000e+00 : f32
    %31 = vector.broadcast %cst_16 : f32 to vector<1x1xf32>
    %32 = arith.select %28, %31, %30 : vector<1x1xi1>, vector<1x1xf32>
    %33 = math.tanh %22 : vector<1x1xf32>
    %34 = arith.mulf %33, %33 : vector<1x1xf32>
    %cst_17 = arith.constant 1.000000e+00 : f32
    %35 = vector.broadcast %cst_17 : f32 to vector<1x1xf32>
    %36 = arith.subf %35, %34 : vector<1x1xf32>
    %37 = arith.mulf %32, %36 : vector<1x1xf32>
    %38 = math.tanh %2 : vector<1x1xf32>
    %39 = arith.mulf %33, %38 : vector<1x1xf32>
    %cst_18 = arith.constant 1.000000e+00 : f32
    %40 = vector.broadcast %cst_18 : f32 to vector<1x1xf32>
    %41 = arith.subf %40, %39 : vector<1x1xf32>
    %42 = arith.divf %37, %41 : vector<1x1xf32>
    %cst_19 = arith.constant 9899.1582 : f32
    %43 = vector.broadcast %cst_19 : f32 to vector<1x1xf32>
    %44 = arith.mulf %43, %42 : vector<1x1xf32>
    %cst_20 = arith.constant 1.40317461E-5 : f32
    %45 = vector.broadcast %cst_20 : f32 to vector<1x1xf32>
    %46 = arith.mulf %45, %20 : vector<1x1xf32>
    %cst_21 = arith.constant 8.64399135E-6 : f32
    %47 = vector.broadcast %cst_21 : f32 to vector<1x1xf32>
    %48 = arith.mulf %47, %20 : vector<1x1xf32>
    %cst_22 = arith.constant 1.40317461E-5 : f32
    %49 = vector.broadcast %cst_22 : f32 to vector<1x1xf32>
    %50 = arith.mulf %49, %44 : vector<1x1xf32>
    %cst_23 = arith.constant 8.64399135E-6 : f32
    %51 = vector.broadcast %cst_23 : f32 to vector<1x1xf32>
    %52 = arith.mulf %51, %44 : vector<1x1xf32>
    %53 = vector.extract_strided_slice %5 {offsets = [0, 0], sizes = [1, 128], strides = [1, 1]} : vector<4x128xf32> to vector<1x128xf32>
    %54 = vector.extract_strided_slice %5 {offsets = [1, 0], sizes = [1, 128], strides = [1, 1]} : vector<4x128xf32> to vector<1x128xf32>
    %55 = vector.extract_strided_slice %5 {offsets = [2, 0], sizes = [1, 128], strides = [1, 1]} : vector<4x128xf32> to vector<1x128xf32>
    %56 = vector.extract_strided_slice %5 {offsets = [3, 0], sizes = [1, 128], strides = [1, 1]} : vector<4x128xf32> to vector<1x128xf32>
    %57 = math.tanh %5 : vector<4x128xf32>
    %58 = vector.extract_strided_slice %57 {offsets = [0, 0], sizes = [1, 128], strides = [1, 1]} : vector<4x128xf32> to vector<1x128xf32>
    %59 = vector.extract_strided_slice %57 {offsets = [1, 0], sizes = [1, 128], strides = [1, 1]} : vector<4x128xf32> to vector<1x128xf32>
    %60 = vector.extract_strided_slice %57 {offsets = [2, 0], sizes = [1, 128], strides = [1, 1]} : vector<4x128xf32> to vector<1x128xf32>
    %61 = vector.extract_strided_slice %57 {offsets = [3, 0], sizes = [1, 128], strides = [1, 1]} : vector<4x128xf32> to vector<1x128xf32>
    %62 = vector.broadcast %46 : vector<1x1xf32> to vector<1x128xf32>
    %63 = arith.mulf %62, %61 : vector<1x128xf32>
    %cst_24 = arith.constant 0.13890247 : f32
    %64 = vector.broadcast %cst_24 : f32 to vector<1x128xf32>
    %65 = arith.mulf %64, %58 : vector<1x128xf32>
    %66 = arith.subf %63, %65 : vector<1x128xf32>
    %67 = arith.addf %53, %66 : vector<1x128xf32>
    %68 = vector.broadcast %50 : vector<1x1xf32> to vector<1x128xf32>
    %69 = arith.mulf %68, %3 : vector<1x128xf32>
    %70 = arith.addf %67, %69 : vector<1x128xf32>
    %71 = vector.broadcast %52 : vector<1x1xf32> to vector<1x128xf32>
    %72 = arith.mulf %71, %4 : vector<1x128xf32>
    %73 = arith.addf %70, %72 : vector<1x128xf32>
    %74 = arith.subf %58, %59 : vector<1x128xf32>
    %cst_25 = arith.constant 0.13890247 : f32
    %75 = vector.broadcast %cst_25 : f32 to vector<1x128xf32>
    %76 = arith.mulf %75, %74 : vector<1x128xf32>
    %77 = arith.addf %54, %76 : vector<1x128xf32>
    %78 = arith.subf %59, %60 : vector<1x128xf32>
    %cst_26 = arith.constant 0.13890247 : f32
    %79 = vector.broadcast %cst_26 : f32 to vector<1x128xf32>
    %80 = arith.mulf %79, %78 : vector<1x128xf32>
    %81 = arith.addf %55, %80 : vector<1x128xf32>
    %82 = arith.subf %60, %61 : vector<1x128xf32>
    %cst_27 = arith.constant 0.13890247 : f32
    %83 = vector.broadcast %cst_27 : f32 to vector<1x128xf32>
    %84 = arith.mulf %83, %82 : vector<1x128xf32>
    %85 = arith.addf %56, %84 : vector<1x128xf32>
    %86 = vector.shape_cast %48 : vector<1x1xf32> to vector<1x1xf32>
    %87 = vector.broadcast %86 : vector<1x1xf32> to vector<1x128xf32>
    %cst_28 = arith.constant 0.000000e+00 : f32
    %88 = vector.broadcast %cst_28 : f32 to vector<1x128xf32>
    %c0_i32 = arith.constant 0 : i32
    %89:10 = scf.while (%arg7 = %c0_i32, %arg8 = %53, %arg9 = %54, %arg10 = %55, %arg11 = %56, %arg12 = %58, %arg13 = %59, %arg14 = %60, %arg15 = %61, %arg16 = %88) : (i32, vector<1x128xf32>, vector<1x128xf32>, vector<1x128xf32>, vector<1x128xf32>, vector<1x128xf32>, vector<1x128xf32>, vector<1x128xf32>, vector<1x128xf32>, vector<1x128xf32>) -> (i32, vector<1x128xf32>, vector<1x128xf32>, vector<1x128xf32>, vector<1x128xf32>, vector<1x128xf32>, vector<1x128xf32>, vector<1x128xf32>, vector<1x128xf32>, vector<1x128xf32>) {
      %c50_i32 = arith.constant 50 : i32
      %95 = arith.cmpi slt, %arg7, %c50_i32 : i32
      %96 = vector.shape_cast %arg16 : vector<1x128xf32> to vector<1x1x128xf32>
      %cst_34 = arith.constant dense<0x7F800000> : vector<1xf32>
      %97 = vector.multi_reduction <minimumf>, %96, %cst_34 [1, 2] : vector<1x1x128xf32> to vector<1xf32>
      %98 = vector.shape_cast %97 : vector<1xf32> to vector<1x1x1xf32>
      %99 = vector.extract %98[0, 0, 0] : f32 from vector<1x1x1xf32>
      %cst_35 = arith.constant 5.000000e-01 : f32
      %100 = arith.cmpf olt, %99, %cst_35 : f32
      %101 = arith.andi %95, %100 : i1
      scf.condition(%101) %arg7, %arg8, %arg9, %arg10, %arg11, %arg12, %arg13, %arg14, %arg15, %arg16 : i32, vector<1x128xf32>, vector<1x128xf32>, vector<1x128xf32>, vector<1x128xf32>, vector<1x128xf32>, vector<1x128xf32>, vector<1x128xf32>, vector<1x128xf32>, vector<1x128xf32>
    } do {
    ^bb0(%arg7: i32, %arg8: vector<1x128xf32>, %arg9: vector<1x128xf32>, %arg10: vector<1x128xf32>, %arg11: vector<1x128xf32>, %arg12: vector<1x128xf32>, %arg13: vector<1x128xf32>, %arg14: vector<1x128xf32>, %arg15: vector<1x128xf32>, %arg16: vector<1x128xf32>):
      %95 = arith.mulf %arg12, %arg12 : vector<1x128xf32>
      %cst_34 = arith.constant 1.000000e+00 : f32
      %96 = vector.broadcast %cst_34 : f32 to vector<1x128xf32>
      %97 = arith.subf %96, %95 : vector<1x128xf32>
      %98 = arith.mulf %arg13, %arg13 : vector<1x128xf32>
      %cst_35 = arith.constant 1.000000e+00 : f32
      %99 = vector.broadcast %cst_35 : f32 to vector<1x128xf32>
      %100 = arith.subf %99, %98 : vector<1x128xf32>
      %101 = arith.mulf %arg14, %arg14 : vector<1x128xf32>
      %cst_36 = arith.constant 1.000000e+00 : f32
      %102 = vector.broadcast %cst_36 : f32 to vector<1x128xf32>
      %103 = arith.subf %102, %101 : vector<1x128xf32>
      %104 = arith.mulf %arg15, %arg15 : vector<1x128xf32>
      %cst_37 = arith.constant 1.000000e+00 : f32
      %105 = vector.broadcast %cst_37 : f32 to vector<1x128xf32>
      %106 = arith.subf %105, %104 : vector<1x128xf32>
      %107 = arith.mulf %87, %arg15 : vector<1x128xf32>
      %cst_38 = arith.constant 0.0855682343 : f32
      %108 = vector.broadcast %cst_38 : f32 to vector<1x128xf32>
      %109 = arith.mulf %108, %arg12 : vector<1x128xf32>
      %110 = arith.subf %107, %109 : vector<1x128xf32>
      %111 = arith.addf %73, %110 : vector<1x128xf32>
      %112 = arith.subf %111, %arg8 : vector<1x128xf32>
      %113 = arith.subf %arg12, %arg13 : vector<1x128xf32>
      %cst_39 = arith.constant 0.0855682343 : f32
      %114 = vector.broadcast %cst_39 : f32 to vector<1x128xf32>
      %115 = arith.mulf %114, %113 : vector<1x128xf32>
      %116 = arith.addf %77, %115 : vector<1x128xf32>
      %117 = arith.subf %116, %arg9 : vector<1x128xf32>
      %118 = arith.subf %arg13, %arg14 : vector<1x128xf32>
      %cst_40 = arith.constant 0.0855682343 : f32
      %119 = vector.broadcast %cst_40 : f32 to vector<1x128xf32>
      %120 = arith.mulf %119, %118 : vector<1x128xf32>
      %121 = arith.addf %81, %120 : vector<1x128xf32>
      %122 = arith.subf %121, %arg10 : vector<1x128xf32>
      %123 = arith.subf %arg14, %arg15 : vector<1x128xf32>
      %cst_41 = arith.constant 0.0855682343 : f32
      %124 = vector.broadcast %cst_41 : f32 to vector<1x128xf32>
      %125 = arith.mulf %124, %123 : vector<1x128xf32>
      %126 = arith.addf %85, %125 : vector<1x128xf32>
      %127 = arith.subf %126, %arg11 : vector<1x128xf32>
      %128 = arith.mulf %87, %106 : vector<1x128xf32>
      %cst_42 = arith.constant 0.0855682343 : f32
      %129 = vector.broadcast %cst_42 : f32 to vector<1x128xf32>
      %130 = arith.mulf %129, %97 : vector<1x128xf32>
      %131 = arith.subf %128, %130 : vector<1x128xf32>
      %cst_43 = arith.constant 1.000000e+00 : f32
      %132 = vector.broadcast %cst_43 : f32 to vector<1x128xf32>
      %133 = arith.subf %131, %132 : vector<1x128xf32>
      %134 = arith.subf %97, %100 : vector<1x128xf32>
      %cst_44 = arith.constant 0.0855682343 : f32
      %135 = vector.broadcast %cst_44 : f32 to vector<1x128xf32>
      %136 = arith.mulf %135, %134 : vector<1x128xf32>
      %cst_45 = arith.constant 1.000000e+00 : f32
      %137 = vector.broadcast %cst_45 : f32 to vector<1x128xf32>
      %138 = arith.subf %136, %137 : vector<1x128xf32>
      %139 = arith.subf %100, %103 : vector<1x128xf32>
      %cst_46 = arith.constant 0.0855682343 : f32
      %140 = vector.broadcast %cst_46 : f32 to vector<1x128xf32>
      %141 = arith.mulf %140, %139 : vector<1x128xf32>
      %cst_47 = arith.constant 1.000000e+00 : f32
      %142 = vector.broadcast %cst_47 : f32 to vector<1x128xf32>
      %143 = arith.subf %141, %142 : vector<1x128xf32>
      %144 = arith.subf %103, %106 : vector<1x128xf32>
      %cst_48 = arith.constant 0.0855682343 : f32
      %145 = vector.broadcast %cst_48 : f32 to vector<1x128xf32>
      %146 = arith.mulf %145, %144 : vector<1x128xf32>
      %cst_49 = arith.constant 1.000000e+00 : f32
      %147 = vector.broadcast %cst_49 : f32 to vector<1x128xf32>
      %148 = arith.subf %146, %147 : vector<1x128xf32>
      %149 = arith.divf %112, %133 : vector<1x128xf32>
      %150 = arith.divf %117, %138 : vector<1x128xf32>
      %151 = arith.divf %122, %143 : vector<1x128xf32>
      %152 = arith.divf %127, %148 : vector<1x128xf32>
      %cst_50 = arith.constant 5.000000e-01 : f32
      %153 = vector.broadcast %cst_50 : f32 to vector<1x128xf32>
      %154 = arith.cmpf olt, %arg16, %153 : vector<1x128xf32>
      %cst_51 = arith.constant 0.000000e+00 : f32
      %155 = vector.broadcast %cst_51 : f32 to vector<1x128xf32>
      %156 = arith.select %154, %149, %155 : vector<1x128xi1>, vector<1x128xf32>
      %157 = arith.subf %arg8, %156 : vector<1x128xf32>
      %cst_52 = arith.constant 0.000000e+00 : f32
      %158 = vector.broadcast %cst_52 : f32 to vector<1x128xf32>
      %159 = arith.select %154, %150, %158 : vector<1x128xi1>, vector<1x128xf32>
      %160 = arith.subf %arg9, %159 : vector<1x128xf32>
      %cst_53 = arith.constant 0.000000e+00 : f32
      %161 = vector.broadcast %cst_53 : f32 to vector<1x128xf32>
      %162 = arith.select %154, %151, %161 : vector<1x128xi1>, vector<1x128xf32>
      %163 = arith.subf %arg10, %162 : vector<1x128xf32>
      %cst_54 = arith.constant 0.000000e+00 : f32
      %164 = vector.broadcast %cst_54 : f32 to vector<1x128xf32>
      %165 = arith.select %154, %152, %164 : vector<1x128xi1>, vector<1x128xf32>
      %166 = arith.subf %arg11, %165 : vector<1x128xf32>
      %167 = math.absf %149 : vector<1x128xf32>
      %168 = math.absf %150 : vector<1x128xf32>
      %169 = arith.maximumf %167, %168 : vector<1x128xf32>
      %170 = math.absf %151 : vector<1x128xf32>
      %171 = math.absf %152 : vector<1x128xf32>
      %172 = arith.maximumf %170, %171 : vector<1x128xf32>
      %173 = arith.maximumf %169, %172 : vector<1x128xf32>
      %cst_55 = arith.constant 9.99999971E-10 : f32
      %174 = vector.broadcast %cst_55 : f32 to vector<1x128xf32>
      %175 = arith.cmpf ole, %173, %174 : vector<1x128xf32>
      %176 = arith.extui %175 : vector<1x128xi1> to vector<1x128xi32>
      %177 = arith.sitofp %176 : vector<1x128xi32> to vector<1x128xf32>
      %178 = arith.maximumf %arg16, %177 : vector<1x128xf32>
      %c1_i32 = arith.constant 1 : i32
      %179 = arith.addi %arg7, %c1_i32 : i32
      %180 = math.tanh %157 : vector<1x128xf32>
      %181 = math.tanh %160 : vector<1x128xf32>
      %182 = math.tanh %163 : vector<1x128xf32>
      %183 = math.tanh %166 : vector<1x128xf32>
      scf.yield %179, %157, %160, %163, %166, %180, %181, %182, %183, %178 : i32, vector<1x128xf32>, vector<1x128xf32>, vector<1x128xf32>, vector<1x128xf32>, vector<1x128xf32>, vector<1x128xf32>, vector<1x128xf32>, vector<1x128xf32>, vector<1x128xf32>
    }
    %90 = tpu.concatenate %89#1, %89#2, %89#3, %89#4 in 0 : vector<1x128xf32>, vector<1x128xf32>, vector<1x128xf32>, vector<1x128xf32> -> vector<4x128xf32>
    %c0_29 = arith.constant 0 : index
    %c0_30 = arith.constant 0 : index
    %91 = vector.load %arg5[%c0_29, %c0_30] : memref<4x128xf32, #tpu.memory_space<vmem>>, vector<4x128xf32>
    tpu.vector_store %arg5[%c0_29, %c0_30], %90 {strides = array<i32>} : memref<4x128xf32, #tpu.memory_space<vmem>>, vector<4x128xf32>,
    %cst_31 = arith.constant 3.091200e+00 : f32
    %92 = vector.broadcast %cst_31 : f32 to vector<1x128xf32>
    %93 = arith.mulf %92, %89#4 : vector<1x128xf32>
    %c0_32 = arith.constant 0 : index
    %c0_33 = arith.constant 0 : index
    %94 = vector.load %arg6[%c0_32, %c0_33] : memref<1x128xf32, #tpu.memory_space<vmem>>, vector<1x128xf32>
    tpu.vector_store %arg6[%c0_32, %c0_33], %93 {strides = array<i32>} : memref<1x128xf32, #tpu.memory_space<vmem>>, vector<1x128xf32>,
    return
  }
  func.func @transform_0(%arg0: i32) -> (i32, i32) {
    %c0_i32 = arith.constant 0 : i32
    %c0_i32_0 = arith.constant 0 : i32
    %c0_i32_1 = arith.constant 0 : i32
    return %c0_i32, %c0_i32_0 : i32, i32
  }
  func.func @transform_1(%arg0: i32) -> (i32, i32) {
    %c0_i32 = arith.constant 0 : i32
    %c0_i32_0 = arith.constant 0 : i32
    return %c0_i32, %arg0 : i32, i32
  }
  func.func @transform_2(%arg0: i32) -> (i32, i32) {
    %c0_i32 = arith.constant 0 : i32
    %c0_i32_0 = arith.constant 0 : i32
    return %c0_i32, %arg0 : i32, i32
  }
  func.func @transform_3(%arg0: i32) -> (i32, i32) {
    %c0_i32 = arith.constant 0 : i32
    %c0_i32_0 = arith.constant 0 : i32
    return %c0_i32, %arg0 : i32, i32
  }
  func.func @transform_4(%arg0: i32) -> (i32, i32) {
    %c0_i32 = arith.constant 0 : i32
    %c0_i32_0 = arith.constant 0 : i32
    return %c0_i32, %arg0 : i32, i32
  }
  func.func @transform_5(%arg0: i32) -> (i32, i32) {
    %c0_i32 = arith.constant 0 : i32
    %c0_i32_0 = arith.constant 0 : i32
    return %c0_i32, %arg0 : i32, i32
  }
}

</mosaic_0001>

<llo_original>
// kernel: moog_vcf_forward.1
$region0: #{moog_vcf_forward.1}
  #allocation0 [shape = 'u32[]', space=smem, size = 0x4, offset = 0x4, fixed_abs, tag = 'smem constant byte address 0x4 - core index']
  #allocation1 [shape = 'u32[144,128]{1,0:T(1,128)}', space=vmem, size = 0x12000, scoped, tag = 'internal scratch']
  %s0 = inlined_call_operand.vmem [shape: f32[1,2], index: 0, kind: input, shape index: {}]
  %s1 = inlined_call_operand.vmem [shape: f32[1,128], index: 1, kind: input, shape index: {}]
  %s2 = inlined_call_operand.vmem [shape: f32[1,128], index: 2, kind: input, shape index: {}]
  %s3 = inlined_call_operand.vmem [shape: f32[4,128], index: 3, kind: input, shape index: {}]
  %s4 = inlined_call_operand.hbm [shape: f32[4,128], index: 4, kind: output, shape index: {0}]
  %s5 = inlined_call_operand.vmem [shape: f32[1,128], index: 5, kind: output, shape index: {1}]
  %6 = xla_tuple %s4, %s5
  %s7 = sld [smem:[#allocation0]]
  $region41: #{moog_vcf_forward.1} parent=0
    _
  %s9 = ssub.s32 1, %s7
  %s10 = scalar_select 0, %s9, %s7
  $region1: #{moog_vcf_forward.1} parent=0
    #allocation2 [shape = 'u8[2048]{0}', space=vmem, size = 0x800, scoped, tag = 'output window, operand 0, single buffered']
    #allocation3 [shape = 's32[1]{0}', space=sflag, size = 0x4, scoped, tag = 'scoped memory for moog_vcf_forward.1']
    %11 = vsyncpa [#allocation3], 0
    // Predicated region
    $region2: #{moog_vcf_forward.1} parent=1 // pred_check
      _
    $region3: #{moog_vcf_forward.1} parent=1 // pred_check_branch
      %13 = sbr.rel (0) target = $region5
    $region4: #{moog_vcf_forward.1} parent=1 // pred_region
      _
    $region5: #{moog_vcf_forward.1} parent=1 // pred_fallthru
      _
    // Predicated region
    $region6: #{moog_vcf_forward.1} parent=1 // pred_check
      _
    $region7: #{moog_vcf_forward.1} parent=1 // pred_check_branch
      %15 = sbr.rel (0) target = $region9
    $region8: #{moog_vcf_forward.1} parent=1 // pred_region
      _
    $region9: #{moog_vcf_forward.1} parent=1 // pred_fallthru
      _
    // Predicated region
    $region10: #{moog_vcf_forward.1} parent=1 // pred_check
      _
    $region11: #{moog_vcf_forward.1} parent=1 // pred_check_branch
      %17 = sbr.rel (0) target = $region13
    $region12: #{moog_vcf_forward.1} parent=1 // pred_region
      _
    $region13: #{moog_vcf_forward.1} parent=1 // pred_fallthru
      _
    // Predicated region
    $region14: #{moog_vcf_forward.1} parent=1 // pred_check
      _
    $region15: #{moog_vcf_forward.1} parent=1 // pred_check_branch
      %19 = sbr.rel (0) target = $region17
    $region16: #{moog_vcf_forward.1} parent=1 // pred_region
      _
    $region17: #{moog_vcf_forward.1} parent=1 // pred_fallthru
      _
    %v20 = vld [vmem:[%s0] sm:$0x1]
    %v21 = vld [vmem:[%s1] sm:$0x1]
    %v22 = vld [vmem:[%s2] sm:$0x1]
    %v23 = vld [vmem:[%s3] sm:$0xf]
    %vm24 = vcmp.eq.f32.partialorder %v20, 0.0
    %v25 = vsel %vm24, 1.0, %v20
    %v26 = vmul.f32 %v25, 4.922
    %v27 = vtanh.pop %v26
    %v28 = vmul.f32 %v27, -9899.158
    %v29 = vtanh.pop %v25
    %v30 = vrcp.pop %v29
    %v31 = vmul.f32 %v28, %v30
    %v32 = vsel %vm24, -48723.656, %v31
    %v33 = vmul.f32 %v20, 1.2305
    %vm34 = vcmp.eq.f32.partialorder %v33, 0.0
    %v35 = vsel %vm34, 1.0, %v33
    %v36 = vtanh.pop %v35
    %v37 = vrcp.pop %v35
    %v38 = vmul.f32 %v36, %v37
    %v39 = vsel %vm34, 1.0, %v38
    %v40 = vtanh.pop %v33
    %v41 = vmul.f32 %v40, %v40
    %v42 = vsub.f32 1.0, %v41
    %v43 = vmul.f32 %v39, %v42
    %v44 = vtanh.pop %v20
    %46 = vrot.lane.b32.xlu0 %v44, 127
    %v47 = vpop.permute.xlu0 %46
    %v49 = vmul.f32 %v40, %v47
    %v50 = vsub.f32 1.0, %v49
    %v51 = vrcp.pop %v50
    %v52 = vmul.f32 %v43, %v51
    %v53 = vmul.f32 %v52, 9899.158
    %v54 = vmul.f32 %v32, 1.4031746e-05
    %v55 = vmul.f32 %v32, 8.643991e-06
    %v56 = vmul.f32 %v53, 1.4031746e-05
    %v57 = vmul.f32 %v53, 8.643991e-06
    %v58 = vtanh.pop %v23
    %60 = vset.pattern.permute.xlu0 0
    %61 = vperm.xlu0 %60, %v54
    %v62 = vpop.permute.xlu0 %61
    %v64 = vlaneseq
    %v65 = vshrl.u32 %v64, 7
    %v66 = vsub.s32 0, %v65
    %v67 = vrot.slane %v62, %v66
    %v68 = vmul.f32 %v67, %v58
    %v69 = vmul.f32 %v58, 0.13890247
    %v71 = vrot.slane %v69, 5
    %v73 = vsub.f32 %v68, %v71
    %v75 = vrot.slane %v73, 3
    %v77 = vadd.f32 %v23, %v75
    %79 = vset.pattern.permute.xlu0 0
    %80 = vperm.xlu0 %79, %v56
    %v81 = vpop.permute.xlu0 %80
    %v83 = vlaneseq
    %v84 = vshrl.u32 %v83, 7
    %v85 = vsub.s32 0, %v84
    %v86 = vrot.slane %v81, %v85
    %v87 = vmul.f32 %v86, %v21
    %v88 = vadd.f32 %v77, %v87
    %90 = vset.pattern.permute.xlu0 0
    %91 = vperm.xlu0 %90, %v57
    %v92 = vpop.permute.xlu0 %91
    %v94 = vlaneseq
    %v95 = vshrl.u32 %v94, 7
    %v96 = vsub.s32 0, %v95
    %v97 = vrot.slane %v92, %v96
    %v98 = vmul.f32 %v97, %v22
    %v99 = vadd.f32 %v88, %v98
    %v101 = vrot.slane %v58, 1
    %v103 = vsub.f32 %v58, %v101
    %v104 = vmul.f32 %v103, 0.13890247
    %v106 = vrot.slane %v104, 7
    %v108 = vadd.f32 %v23, %v106
    %110 = vset.pattern.permute.xlu0 0
    %111 = vperm.xlu0 %110, %v55
    %v112 = vpop.permute.xlu0 %111
    %v114 = vlaneseq
    %v115 = vshrl.u32 %v114, 7
    %v116 = vsub.s32 0, %v115
    %v117 = vrot.slane %v112, %v116
    // While loop
    $region18: #{moog_vcf_forward.1} parent=1 // loop_pre_header
      _
    $region19: #{moog_vcf_forward.1} parent=1 // loop_header
      %s119 = sphi 0, %s287
      %v120 = vphi %v23, %v242
      %v121 = vphi %v23, %v250
      %v122 = vphi %v23, %v258
      %v123 = vphi %v23, %v266
      %v124 = vphi %v58, %v288
      %v125 = vphi %v58, %v289
      %v126 = vphi %v58, %v290
      %v127 = vphi %v58, %v291
      %v128 = vphi 0.0, %v286
      %p129 = scmp.lt.s32.totalorder %s119, 50
      %vm130 = vcmask 1040384
      %v131 = vsel %vm130, %v128, inf
      %132 = vmin.xlane.f32.xlu0 %v131
      %v133 = vpop.xlane.xlu0 %132
      %v134 = vrot.slane %v133, 4
      %v135 = vmin.f32 %v133, %v134
      %v136 = vrot.slane %v135, 2
      %v137 = vmin.f32 %v135, %v136
      %v138 = vrot.slane %v137, 1
      %v139 = vmin.f32 %v137, %v138
      %s140 = vtos %v139
      %p141 = scmp.lt.f32.partialorder %s140, 0.5
      %p142 = pnand %p129, %p141
      %p143 = pneg %p142
    $region20: #{moog_vcf_forward.1} parent=1 // loop_header_branch
      %145 = sbr.rel (%p142) target = $region24
    $region21: #{moog_vcf_forward.1} parent=1 // loop_body
      %v146 = vmul.f32 %v124, %v124
      %v147 = vsub.f32 1.0, %v146
      %v148 = vmul.f32 %v125, %v125
      %v149 = vsub.f32 1.0, %v148
      %v150 = vmul.f32 %v126, %v126
      %v151 = vsub.f32 1.0, %v150
      %v152 = vmul.f32 %v127, %v127
      %v153 = vsub.f32 1.0, %v152
      %v154 = vmul.f32 %v117, %v127
      %v155 = vmul.f32 %v124, 0.085568234
      %v157 = vrot.slane %v155, 5
      %v159 = vsub.f32 %v154, %v157
      %v161 = vrot.slane %v159, 3
      %v163 = vadd.f32 %v99, %v161
      %v164 = vsub.f32 %v163, %v120
      %v166 = vrot.slane %v125, 1
      %v168 = vsub.f32 %v124, %v166
      %v169 = vmul.f32 %v168, 0.085568234
      %v171 = vrot.slane %v169, 7
      %v173 = vadd.f32 %v108, %v171
      %v174 = vsub.f32 %v173, %v121
      %v176 = vrot.slane %v126, 1
      %v178 = vsub.f32 %v125, %v176
      %v179 = vmul.f32 %v178, 0.085568234
      %v181 = vrot.slane %v179, 7
      %v183 = vadd.f32 %v108, %v181
      %v184 = vsub.f32 %v183, %v122
      %v186 = vrot.slane %v127, 1
      %v188 = vsub.f32 %v126, %v186
      %v189 = vmul.f32 %v188, 0.085568234
      %v191 = vrot.slane %v189, 7
      %v193 = vadd.f32 %v108, %v191
      %v194 = vsub.f32 %v193, %v123
      %v195 = vmul.f32 %v117, %v153
      %v196 = vmul.f32 %v147, 0.085568234
      %v198 = vrot.slane %v196, 5
      %v200 = vsub.f32 %v195, %v198
      %v201 = vsub.f32 %v200, 1.0
      %v203 = vrot.slane %v149, 1
      %v205 = vsub.f32 %v147, %v203
      %v206 = vmul.f32 %v205, 0.085568234
      %v207 = vsub.f32 %v206, 1.0
      %v209 = vrot.slane %v151, 1
      %v211 = vsub.f32 %v149, %v209
      %v212 = vmul.f32 %v211, 0.085568234
      %v213 = vsub.f32 %v212, 1.0
      %v215 = vrot.slane %v153, 1
      %v217 = vsub.f32 %v151, %v215
      %v218 = vmul.f32 %v217, 0.085568234
      %v219 = vsub.f32 %v218, 1.0
      %v221 = vrot.slane %v201, 3
      %v223 = vrcp.pop %v221
      %v224 = vmul.f32 %v164, %v223
      %v226 = vrot.slane %v207, 7
      %v228 = vrcp.pop %v226
      %v229 = vmul.f32 %v174, %v228
      %v231 = vrot.slane %v213, 7
      %v233 = vrcp.pop %v231
      %v234 = vmul.f32 %v184, %v233
      %v236 = vrot.slane %v219, 7
      %v238 = vrcp.pop %v236
      %v239 = vmul.f32 %v194, %v238
      %vm240 = vcmp.lt.f32.partialorder %v128, 0.5
      %v241 = vsel %vm240, %v224, 0.0
      %v242 = vsub.f32 %v120, %v241
      %v244 = vrot.slane %v229, 1
      %v246 = vsel %vm240, %v244, 0.0
      %v248 = vrot.slane %v246, 7
      %v250 = vsub.f32 %v121, %v248
      %v252 = vrot.slane %v234, 2
      %v254 = vsel %vm240, %v252, 0.0
      %v256 = vrot.slane %v254, 6
      %v258 = vsub.f32 %v122, %v256
      %v260 = vrot.slane %v239, 3
      %v262 = vsel %vm240, %v260, 0.0
      %v264 = vrot.slane %v262, 5
      %v266 = vsub.f32 %v123, %v264
      %v267 = vand.u32 2147483647, %v224
      %v268 = vand.u32 2147483647, %v229
      %v270 = vrot.slane %v268, 1
      %v272 = vmax.f32 %v267, %v270
      %v273 = vand.u32 2147483647, %v234
      %v274 = vand.u32 2147483647, %v239
      %v276 = vrot.slane %v274, 1
      %v278 = vmax.f32 %v273, %v276
      %v280 = vrot.slane %v278, 2
      %v282 = vmax.f32 %v272, %v280
      %vm283 = vcmp.le.f32.partialorder %v282, 1e-09
      %v284 = vsel %vm283, 1, 0
      %v285 = vcvt.s32.f32 %v284
      %v286 = vmax.f32 %v128, %v285
      %s287 = sadd.s32 %s119, 1
      %v288 = vtanh.pop %v242
      %v289 = vtanh.pop %v250
      %v290 = vtanh.pop %v258
      %v291 = vtanh.pop %v266
    $region22: #{moog_vcf_forward.1} parent=1 // loop_footer
      _
    $region23: #{moog_vcf_forward.1} parent=1 // loop_footer_branch
      %118 = sbr.rel target = $region19
    $region24: #{moog_vcf_forward.1} parent=1 // loop_exit
      _
    %vm292 = vcmask 1040384
    %v293 = vsel %vm292, %v120, %v121
    %vm294 = vcmask 1041408
    %v295 = vsel %vm294, %v293, %v122
    %vm296 = vcmask 1042432
    %v297 = vsel %vm296, %v295, %v123
    %298 = vst [vmem:[#allocation2] sm:$0xf] %v297
    %v299 = vmul.f32 %v123, 3.0912
    %300 = vst [vmem:[%s5 - $0x3] sm:$0x8] %v299
    // Predicated region
    $region25: #{moog_vcf_forward.1} parent=1 // pred_check
      _
    $region26: #{moog_vcf_forward.1} parent=1 // pred_check_branch
      %302 = sbr.rel (0) target = $region28
    $region27: #{moog_vcf_forward.1} parent=1 // pred_region
      %s304 = ssub.s32 64, 64
      %305 = vsyncadd [#allocation3], %s304
      %s307 = sshll.u32 [#allocation2], 4
      %s308 = int_to_ptr.vmem [resolvable:$true] %s307
      %310 = dma.vmem_to_hbm [thread:$0]  %s308, 64, %s4, [#allocation3]
    $region28: #{moog_vcf_forward.1} parent=1 // pred_fallthru
      _
    // Predicated region
    $region29: #{moog_vcf_forward.1} parent=1 // pred_check
      _
    $region30: #{moog_vcf_forward.1} parent=1 // pred_check_branch
      %312 = sbr.rel (0) target = $region32
    $region31: #{moog_vcf_forward.1} parent=1 // pred_region
      _
    $region32: #{moog_vcf_forward.1} parent=1 // pred_fallthru
      _
    // Predicated region
    $region33: #{moog_vcf_forward.1} parent=1 // pred_check
      _
    $region34: #{moog_vcf_forward.1} parent=1 // pred_check_branch
      %314 = sbr.rel (0) target = $region36
    $region35: #{moog_vcf_forward.1} parent=1 // pred_region
      %315 = dma.done [#allocation3], 64
    $region36: #{moog_vcf_forward.1} parent=1 // pred_fallthru
      _
    // Predicated region
    $region37: #{moog_vcf_forward.1} parent=1 // pred_check
      _
    $region38: #{moog_vcf_forward.1} parent=1 // pred_check_branch
      %317 = sbr.rel (0) target = $region40
    $region39: #{moog_vcf_forward.1} parent=1 // pred_region
      _
    $region40: #{moog_vcf_forward.1} parent=1 // pred_fallthru
      _
    %318 = vsyncpa [#allocation3], 1

</llo_original>
